<compile_context>
chip_gen: v7x
topology: tpu7x:2x2x1
jax: 0.10.0
libtpu: 0.0.40
codegen_flags: <defaults>
</compile_context>

<pallas_src>
import jax
import jax.numpy as jnp
from jax.experimental import pallas as pl
from jax.experimental.pallas import tpu as pltpu

_LANE_CANDIDATES = (1024, 512, 256, 128)   # lane-dense widths (multiples of 128)
_MIN_TILE_BYTES = 2 * 1024 * 1024          # floor for per-buffer tile budget
_MAX_TILE_BYTES = 8 * 1024 * 1024          # cap   for per-buffer tile budget
_MIN_SPLIT_BYTES = 2 * 1024 * 1024         # above this, force >=4 grid steps
_DEFAULT_VMEM_BYTES = 64 * 1024 * 1024     # conservative default (v7x-sized)


def _vmem_capacity_bytes():
    """Physical per-core VMEM, queried at trace time (fallback: 64 MiB)."""
    try:
        return int(pltpu.get_tpu_info().vmem_capacity_bytes)
    except Exception:
        return _DEFAULT_VMEM_BYTES


def _budgets():
    """(per-buffer tile bytes, vmem_limit_bytes) for the current generation."""
    vmem = _vmem_capacity_bytes()
    # 4 live tiles (in + out, each double-buffered): keep 4*tile <= vmem/4.
    tile = vmem // 16
    tile = max(_MIN_TILE_BYTES, min(_MAX_TILE_BYTES, tile))
    # Scoped-VMEM limit: 2x headroom over the 4*tile footprint, never more
    # than half of physical VMEM and never above 64 MiB.
    limit = min(vmem // 2, 64 * 1024 * 1024)
    limit = max(limit, 8 * tile)
    limit = min(limit, vmem)
    return tile, limit


def _relu_kernel(x_ref, o_ref):
    # Elementwise ReLU on the current (block_rows, lane) VMEM tile (VPU op).
    o_ref[...] = jnp.maximum(x_ref[...], 0).astype(o_ref.dtype)


def _relu_2d(x2d, block_rows, vmem_limit):
    rows, cols = x2d.shape
    itemsize = jnp.dtype(x2d.dtype).itemsize
    grid = (pl.cdiv(rows, block_rows),)  # partial last block masked by Pallas
    return pl.pallas_call(
        _relu_kernel,
        out_shape=jax.ShapeDtypeStruct((rows, cols), x2d.dtype),
        grid_spec=pltpu.PrefetchScalarGridSpec(
            num_scalar_prefetch=0,
            grid=grid,
            in_specs=[pl.BlockSpec((block_rows, cols), lambda i: (i, 0))],
            out_specs=pl.BlockSpec((block_rows, cols), lambda i: (i, 0)),
        ),
        # TODO(synk): on v7x verify in a profile that "parallel" actually shards
        # this axis across both TensorCores; if not, switch to pltpu.CORE_PARALLEL.
        compiler_params=pltpu.CompilerParams(
            dimension_semantics=("parallel",),
            vmem_limit_bytes=vmem_limit,
        ),
        # Memory-bound cost hint so XLA overlaps surrounding ops correctly.
        cost_estimate=pl.CostEstimate(
            flops=rows * cols,
            transcendentals=0,
            bytes_accessed=2 * rows * cols * itemsize,
        ),
        # NOTE: no input_output_aliases — outside of a donating jit the input
        # cannot actually be aliased, and XLA would insert a defensive copy.
    )(x2d)


def _pick_layout(n, itemsize, tile_bytes):
    """Pick (lane_width, block_rows) for a flat array of n elements."""
    lane = None
    for w in _LANE_CANDIDATES:
        if n % w == 0:
            lane = w
            break
    if lane is None:
        return None, None
    rows = n // lane

    # Dtype-aware row tile: ~tile_bytes per buffer, rows a multiple of 32 so
    # bf16/int8 sublane packing stays full (and f32's 8-sublane rule holds).
    block_rows = tile_bytes // (lane * itemsize)
    block_rows = max(32, (block_rows // 32) * 32)

    if block_rows >= rows:
        total_bytes = n * itemsize
        if total_bytes > _MIN_SPLIT_BYTES and rows > 32:
            # Avoid a single-block grid: >= ~4 steps lets Pallas overlap the
            # input DMA, the VPU pass, and the output DMA.
            quarter = pl.cdiv(rows, 4)
            block_rows = max(32, ((quarter + 31) // 32) * 32)
            block_rows = min(block_rows, rows)
        else:
            block_rows = rows  # full-extent block is always a legal block shape
    return lane, block_rows


@jax.jit
def pallas_relu(x):
    """ReLU over an arbitrary-shaped array via a lane-dense Pallas kernel."""
    orig_shape = x.shape
    n = x.size
    if n == 0:
        return x
    itemsize = jnp.dtype(x.dtype).itemsize

    tile_bytes, vmem_limit = _budgets()
    lane, block_rows = _pick_layout(n, itemsize, tile_bytes)

    if lane is None:
        # Ragged total (n % 128 != 0).  A pad + final-slice Pallas path would
        # roughly triple HBM traffic, so use a single XLA elementwise pass
        # which is already at the HBM roofline for this memory-bound op.
        # TODO(synk): fold the ragged tail into the kernel via a scalar-prefetched
        # length + masked pltpu.store instead of leaving it to XLA.
        return jnp.maximum(x, 0).astype(x.dtype)

    # Copy-free path: the reshape is a bitcast under jit, no padding needed.
    out2d = _relu_2d(x.reshape(n // lane, lane), block_rows, vmem_limit)
    return out2d.reshape(orig_shape)


class Hookoutput:
    """JAX/Pallas analogue of the PyTorch Hookoutput wrapper.

    Runs the wrapped operation (here: the Pallas ReLU kernel) and records the
    output in `self.activation` — stop_gradient mirrors `.detach()`.

    TODO(synk): long term, fuse the wrapped elementwise op into the producer /
    quantizer (ClipQuan) epilogue inside one pallas_call; a standalone pass is
    capped at the HBM roofline.
    """

    def __init__(self, operation=pallas_relu):
        self.activation = 0.0
        self.operation = operation

    def __call__(self, x):
        output = self.operation(x)
        self.activation = jax.lax.stop_gradient(output)  # mirrors .detach()
        return output


if __name__ == "__main__":
    key = jax.random.PRNGKey(0)
    # NCHW input, small shapes: batch=2, channels=4, spatial=16x16
    x = jax.random.normal(key, (2, 4, 16, 16), dtype=jnp.float32)

    hook = Hookoutput()
    out = hook(x)
    out = jax.block_until_ready(out)

    # Sanity check against plain-JAX reference.
    ref = jnp.maximum(x, 0.0)
    assert out.shape == x.shape and out.dtype == x.dtype
    assert jnp.allclose(out, ref), "Pallas ReLU mismatch"
    assert jnp.allclose(hook.activation, ref), "activation hook mismatch"

    print("KERNEL_OK")
</pallas_src>

<mosaic_0001>
module attributes {stable_mosaic.version = 11 : i64} {
  func.func @_relu_kernel(%arg0: i32, %arg1: memref<2x1024xf32, #tpu.memory_space<vmem>>, %arg2: memref<2x1024xf32, #tpu.memory_space<vmem>>) attributes {dimension_semantics = [#tpu.dimension_semantics<parallel>], iteration_bounds = array<i64: 1>, scalar_prefetch = 0 : i64, scratch_operands = 0 : i64, tpu.core_type = #tpu.core_type<tc>, window_params = [{transform_indices = @transform_0, window_bounds = array<i64: 2, 1024>}, {transform_indices = @transform_1, window_bounds = array<i64: 2, 1024>}]} {
    %c0 = arith.constant 0 : index
    %c0_0 = arith.constant 0 : index
    %0 = vector.load %arg1[%c0, %c0_0] : memref<2x1024xf32, #tpu.memory_space<vmem>>, vector<2x1024xf32>
    %cst = arith.constant 0.000000e+00 : f32
    %1 = vector.broadcast %cst : f32 to vector<2x1024xf32>
    %2 = arith.maximumf %0, %1 : vector<2x1024xf32>
    %c0_1 = arith.constant 0 : index
    %c0_2 = arith.constant 0 : index
    %3 = vector.load %arg2[%c0_1, %c0_2] : memref<2x1024xf32, #tpu.memory_space<vmem>>, vector<2x1024xf32>
    tpu.vector_store %arg2[%c0_1, %c0_2], %2 {strides = array<i32>} : memref<2x1024xf32, #tpu.memory_space<vmem>>, vector<2x1024xf32>,
    return
  }
  func.func @transform_0(%arg0: i32) -> (i32, i32) {
    %c0_i32 = arith.constant 0 : i32
    %c0_i32_0 = arith.constant 0 : i32
    return %arg0, %c0_i32 : i32, i32
  }
  func.func @transform_1(%arg0: i32) -> (i32, i32) {
    %c0_i32 = arith.constant 0 : i32
    %c0_i32_0 = arith.constant 0 : i32
    return %arg0, %c0_i32 : i32, i32
  }
}

</mosaic_0001>

<llo_original>
// kernel: pallas_relu.1
$region0: #{pallas_relu.1}
  #allocation0 [shape = 'u32[]', space=smem, size = 0x4, offset = 0x4, fixed_abs, tag = 'smem constant byte address 0x4 - core index']
  #allocation1 [shape = 'u32[144,128]{1,0:T(1,128)}', space=vmem, size = 0x12000, scoped, tag = 'internal scratch']
  %s0 = inlined_call_operand.vmem [shape: f32[2,1024], index: 0, kind: input, shape index: {}]
  %s1 = inlined_call_operand.vmem [shape: f32[2,1024], index: 1, kind: output, shape index: {}]
  %s2 = sld [smem:[#allocation0]]
  $region14: #{pallas_relu.1} parent=0
    _
  %s4 = ssub.s32 1, %s2
  %s5 = scalar_select 0, %s4, %s2
  // Predicated region
  $region2: #{pallas_relu.1} parent=0 // pred_check
    _
  $region3: #{pallas_relu.1} parent=0 // pred_check_branch
    %7 = sbr.rel (0) target = $region5
  $region4: #{pallas_relu.1} parent=0 // pred_region
    _
  $region5: #{pallas_relu.1} parent=0 // pred_fallthru
    _
  %v8 = vld [vmem:[%s0] sm:$0xff]
  %v9 = vld [vmem:[%s0 + $0x8] sm:$0xff]
  %v10 = vmax.f32 %v8, 0.0
  %v11 = vmax.f32 %v9, 0.0
  %12 = vst [vmem:[%s1] sm:$0xff] %v10
  %13 = vst [vmem:[%s1 + $0x8] sm:$0xff] %v11
  // Predicated region
  $region6: #{pallas_relu.1} parent=0 // pred_check
    _
  $region7: #{pallas_relu.1} parent=0 // pred_check_branch
    %15 = sbr.rel (0) target = $region9
  $region8: #{pallas_relu.1} parent=0 // pred_region
    _
  $region9: #{pallas_relu.1} parent=0 // pred_fallthru
    _
  // Predicated region
  $region10: #{pallas_relu.1} parent=0 // pred_check
    _
  $region11: #{pallas_relu.1} parent=0 // pred_check_branch
    %17 = sbr.rel (0) target = $region13
  $region12: #{pallas_relu.1} parent=0 // pred_region
    _
  $region13: #{pallas_relu.1} parent=0 // pred_fallthru
    _

</llo_original>
